<compile_context>
chip_gen: v7x
topology: tpu7x:2x2x1
jax: 0.10.0
libtpu: 0.0.40
codegen_flags: <defaults>
</compile_context>

<pallas_src>
import jax
import jax.numpy as jnp
from jax.experimental import pallas as pl
from jax.experimental.pallas import tpu as pltpu

DENSITY = 985.0
_CS = 16  # sublane chunk for the inner compute loop (bounds vreg live ranges)


def mass_kernel(comp_ref, vol_ref, acc_ref):
    """comp_ref: (1, 9, B, ts, 128); vol_ref: (B, 1); acc_ref: (B, ts, 128)."""
    k = pl.program_id(0)

    @pl.when(k == 0)
    def _init():
        acc_ref[...] = jnp.zeros_like(acc_ref)

    ts = acc_ref.shape[1]
    n_chunks = ts // _CS  # static

    def body(c, carry):
        s = pl.multiple_of(c * _CS, _CS)
        sl = pl.ds(s, _CS)
        x0 = comp_ref[0, 0, :, sl, :]
        x1 = comp_ref[0, 1, :, sl, :]
        x2 = comp_ref[0, 2, :, sl, :]
        y0 = comp_ref[0, 3, :, sl, :]
        y1 = comp_ref[0, 4, :, sl, :]
        y2 = comp_ref[0, 5, :, sl, :]
        z0 = comp_ref[0, 6, :, sl, :]
        z1 = comp_ref[0, 7, :, sl, :]
        z2 = comp_ref[0, 8, :, sl, :]
        # Factored signed-volume: 9 multiplies, elementwise only (pure VPU).
        vol = (x0 * (y1 * z2 - y2 * z1)
               + x1 * (y2 * z0 - y0 * z2)
               + x2 * (y0 * z1 - y1 * z0))          # (B, _CS, 128)
        acc_ref[:, sl, :] += vol
        return carry

    jax.lax.fori_loop(0, n_chunks, body, 0)

    @pl.when(k == pl.num_programs(0) - 1)
    def _finalize():
        # Single XLU reduction at the end: (B, ts, 128) -> (B, 1).
        part = jnp.sum(acc_ref[...], axis=1)              # (B, 128)
        vol_ref[...] = jnp.sum(part, axis=1, keepdims=True)  # (B, 1)


def measurements_loss(v, faces, *, tf=16384):
    """v: (B, V, 3) float32, faces: (F, 3) int32 -> {'mass': (B,), 'height': ()}."""
    assert tf % 2048 == 0, "tf must be a multiple of 2048"
    B, V, _ = v.shape
    F = faces.shape[0]
    v = v.astype(jnp.float32)
    faces = faces.astype(jnp.int32)

    # Height: abs of global max of y.  Trivial scalar reduce -> plain JAX.
    height = jnp.abs(jnp.max(v[:, :, 1]))

    # Clamp the face tile for small meshes (avoid paying full-tile padding).
    f_round = ((F + 2047) // 2048) * 2048
    tf_eff = min(tf, f_round)
    ts = tf_eff // 128                       # multiple of 16 by construction
    n_tiles = pl.cdiv(F, tf_eff)
    F_pad = n_tiles * tf_eff

    # --- glue: gather triangle corners (torch.index_select equivalent) and
    # pack the face axis as (tile, sublane, lane), tile-major so each grid
    # step's block is one contiguous DMA. ---
    tris = v[:, faces.reshape(-1), :].reshape(B, F, 3, 3)      # (B, F, corner, xyz)
    comp = jnp.stack(
        [tris[:, :, 0, 0], tris[:, :, 1, 0], tris[:, :, 2, 0],   # x0 x1 x2
         tris[:, :, 0, 1], tris[:, :, 1, 1], tris[:, :, 2, 1],   # y0 y1 y2
         tris[:, :, 0, 2], tris[:, :, 1, 2], tris[:, :, 2, 2]],  # z0 z1 z2
        axis=0)                                                   # (9, B, F)
    comp = jnp.pad(comp, ((0, 0), (0, 0), (0, F_pad - F)))        # zero pad -> vol 0
    comp = comp.reshape(9, B, n_tiles, ts, 128)
    comp = comp.transpose(2, 0, 1, 3, 4)                          # (n_tiles, 9, B, ts, 128)

    # VMEM budget: double-buffered input block + resident accumulator.
    block_bytes = 9 * B * tf_eff * 4
    acc_bytes = B * tf_eff * 4
    needed = 2 * block_bytes + acc_bytes + (2 << 20)
    assert needed <= (48 << 20), (
        "tile too large for v7x VMEM (64 MiB/TC): reduce tf or B")
    vmem_limit = int(min(max(needed, 16 << 20), 48 << 20))

    vol = pl.pallas_call(
        mass_kernel,
        out_shape=jax.ShapeDtypeStruct((B, 1), jnp.float32),
        grid_spec=pltpu.PrefetchScalarGridSpec(
            num_scalar_prefetch=0,
            grid=(n_tiles,),
            in_specs=[
                pl.BlockSpec((1, 9, B, ts, 128),
                             lambda k: (k, 0, 0, 0, 0)),
            ],
            out_specs=pl.BlockSpec((B, 1), lambda k: (0, 0)),
            scratch_shapes=[pltpu.VMEM((B, ts, 128), jnp.float32)],
        ),
        compiler_params=pltpu.CompilerParams(
            dimension_semantics=("arbitrary",),
            vmem_limit_bytes=vmem_limit),
    )(comp)

    mass = jnp.abs(vol[:, 0]) / 6.0 * DENSITY
    return {"mass": mass, "height": height}


def reference(v, faces):
    """Pure-JAX port of the PyTorch forward, for correctness checking."""
    B = v.shape[0]
    tris = v[:, faces.reshape(-1), :].reshape(B, -1, 3, 3)
    x = tris[..., 0]
    y = tris[..., 1]
    z = tris[..., 2]
    vol = (-x[:, :, 2] * y[:, :, 1] * z[:, :, 0]
           + x[:, :, 1] * y[:, :, 2] * z[:, :, 0]
           + x[:, :, 2] * y[:, :, 0] * z[:, :, 1]
           - x[:, :, 0] * y[:, :, 2] * z[:, :, 1]
           - x[:, :, 1] * y[:, :, 0] * z[:, :, 2]
           + x[:, :, 0] * y[:, :, 1] * z[:, :, 2])
    mass = jnp.abs(vol.sum(axis=1)) / 6.0 * DENSITY
    height = jnp.abs(jnp.max(v[:, :, 1]))
    return mass, height


if __name__ == "__main__":
    key = jax.random.PRNGKey(0)
    kv, kf = jax.random.split(key)

    B, V, F = 2, 64, 300
    v = jax.random.normal(kv, (B, V, 3), dtype=jnp.float32)
    # "faces" parameter of the module: deterministic synthetic face indices.
    faces = jax.random.randint(kf, (F, 3), 0, V, dtype=jnp.int32)

    out = measurements_loss(v, faces)
    jax.block_until_ready(out)

    ref_mass, ref_height = reference(v, faces)
    assert jnp.allclose(out["mass"], ref_mass, rtol=1e-4, atol=1e-3), (
        out["mass"], ref_mass)
    assert jnp.allclose(out["height"], ref_height, rtol=1e-5, atol=1e-5), (
        out["height"], ref_height)

    print("KERNEL_OK")
</pallas_src>

<mosaic_0001>
module attributes {stable_mosaic.version = 11 : i64} {
  func.func @mass_kernel(%arg0: i32, %arg1: memref<1x9x2x16x128xf32, #tpu.memory_space<vmem>>, %arg2: memref<2x1xf32, #tpu.memory_space<vmem>>, %arg3: memref<2x16x128xf32, #tpu.memory_space<vmem>>) attributes {dimension_semantics = [#tpu.dimension_semantics<arbitrary>], iteration_bounds = array<i64: 1>, scalar_prefetch = 0 : i64, scratch_operands = 1 : i64, tpu.core_type = #tpu.core_type<tc>, window_params = [{transform_indices = @transform_0, window_bounds = array<i64: 1, 9, 2, 16, 128>}, {pipeline_mode = #tpu.pipeline_mode<synchronous>, transform_indices = @transform_1, window_bounds = array<i64: 2, 1>}]} {
    %c0_i32 = arith.constant 0 : i32
    %0 = arith.cmpi eq, %arg0, %c0_i32 : i32
    %1 = arith.extui %0 : i1 to i32
    %c0_i32_0 = arith.constant 0 : i32
    %2 = arith.cmpi ne, %1, %c0_i32_0 : i32
    scf.if %2 {
      %cst = arith.constant 0.000000e+00 : f32
      %54 = vector.broadcast %cst : f32 to vector<2x16x128xf32>
      %c0_35 = arith.constant 0 : index
      %c0_36 = arith.constant 0 : index
      %c0_37 = arith.constant 0 : index
      %55 = vector.load %arg3[%c0_35, %c0_36, %c0_37] : memref<2x16x128xf32, #tpu.memory_space<vmem>>, vector<2x16x128xf32>
      tpu.vector_store %arg3[%c0_35, %c0_36, %c0_37], %54 {strides = array<i32>} : memref<2x16x128xf32, #tpu.memory_space<vmem>>, vector<2x16x128xf32>,
    } else {
    }
    %c0_i32_1 = arith.constant 0 : i32
    %c16_i32 = arith.constant 16 : i32
    %3 = arith.muli %c0_i32_1, %c16_i32 : i32
    %4 = tpu.assume_multiple %3, 16 : i32
    %c0 = arith.constant 0 : index
    %c0_2 = arith.constant 0 : index
    %c0_3 = arith.constant 0 : index
    %5 = arith.index_cast %4 : i32 to index
    %c0_4 = arith.constant 0 : index
    %6 = vector.load %arg1[%c0, %c0_2, %c0_3, %5, %c0_4] : memref<1x9x2x16x128xf32, #tpu.memory_space<vmem>>, vector<1x1x2x16x128xf32>
    %7 = vector.shape_cast %6 : vector<1x1x2x16x128xf32> to vector<2x16x128xf32>
    %c0_5 = arith.constant 0 : index
    %c1 = arith.constant 1 : index
    %c0_6 = arith.constant 0 : index
    %8 = arith.index_cast %4 : i32 to index
    %c0_7 = arith.constant 0 : index
    %9 = vector.load %arg1[%c0_5, %c1, %c0_6, %8, %c0_7] : memref<1x9x2x16x128xf32, #tpu.memory_space<vmem>>, vector<1x1x2x16x128xf32>
    %10 = vector.shape_cast %9 : vector<1x1x2x16x128xf32> to vector<2x16x128xf32>
    %c0_8 = arith.constant 0 : index
    %c2 = arith.constant 2 : index
    %c0_9 = arith.constant 0 : index
    %11 = arith.index_cast %4 : i32 to index
    %c0_10 = arith.constant 0 : index
    %12 = vector.load %arg1[%c0_8, %c2, %c0_9, %11, %c0_10] : memref<1x9x2x16x128xf32, #tpu.memory_space<vmem>>, vector<1x1x2x16x128xf32>
    %13 = vector.shape_cast %12 : vector<1x1x2x16x128xf32> to vector<2x16x128xf32>
    %c0_11 = arith.constant 0 : index
    %c3 = arith.constant 3 : index
    %c0_12 = arith.constant 0 : index
    %14 = arith.index_cast %4 : i32 to index
    %c0_13 = arith.constant 0 : index
    %15 = vector.load %arg1[%c0_11, %c3, %c0_12, %14, %c0_13] : memref<1x9x2x16x128xf32, #tpu.memory_space<vmem>>, vector<1x1x2x16x128xf32>
    %16 = vector.shape_cast %15 : vector<1x1x2x16x128xf32> to vector<2x16x128xf32>
    %c0_14 = arith.constant 0 : index
    %c4 = arith.constant 4 : index
    %c0_15 = arith.constant 0 : index
    %17 = arith.index_cast %4 : i32 to index
    %c0_16 = arith.constant 0 : index
    %18 = vector.load %arg1[%c0_14, %c4, %c0_15, %17, %c0_16] : memref<1x9x2x16x128xf32, #tpu.memory_space<vmem>>, vector<1x1x2x16x128xf32>
    %19 = vector.shape_cast %18 : vector<1x1x2x16x128xf32> to vector<2x16x128xf32>
    %c0_17 = arith.constant 0 : index
    %c5 = arith.constant 5 : index
    %c0_18 = arith.constant 0 : index
    %20 = arith.index_cast %4 : i32 to index
    %c0_19 = arith.constant 0 : index
    %21 = vector.load %arg1[%c0_17, %c5, %c0_18, %20, %c0_19] : memref<1x9x2x16x128xf32, #tpu.memory_space<vmem>>, vector<1x1x2x16x128xf32>
    %22 = vector.shape_cast %21 : vector<1x1x2x16x128xf32> to vector<2x16x128xf32>
    %c0_20 = arith.constant 0 : index
    %c6 = arith.constant 6 : index
    %c0_21 = arith.constant 0 : index
    %23 = arith.index_cast %4 : i32 to index
    %c0_22 = arith.constant 0 : index
    %24 = vector.load %arg1[%c0_20, %c6, %c0_21, %23, %c0_22] : memref<1x9x2x16x128xf32, #tpu.memory_space<vmem>>, vector<1x1x2x16x128xf32>
    %25 = vector.shape_cast %24 : vector<1x1x2x16x128xf32> to vector<2x16x128xf32>
    %c0_23 = arith.constant 0 : index
    %c7 = arith.constant 7 : index
    %c0_24 = arith.constant 0 : index
    %26 = arith.index_cast %4 : i32 to index
    %c0_25 = arith.constant 0 : index
    %27 = vector.load %arg1[%c0_23, %c7, %c0_24, %26, %c0_25] : memref<1x9x2x16x128xf32, #tpu.memory_space<vmem>>, vector<1x1x2x16x128xf32>
    %28 = vector.shape_cast %27 : vector<1x1x2x16x128xf32> to vector<2x16x128xf32>
    %c0_26 = arith.constant 0 : index
    %c8 = arith.constant 8 : index
    %c0_27 = arith.constant 0 : index
    %29 = arith.index_cast %4 : i32 to index
    %c0_28 = arith.constant 0 : index
    %30 = vector.load %arg1[%c0_26, %c8, %c0_27, %29, %c0_28] : memref<1x9x2x16x128xf32, #tpu.memory_space<vmem>>, vector<1x1x2x16x128xf32>
    %31 = vector.shape_cast %30 : vector<1x1x2x16x128xf32> to vector<2x16x128xf32>
    %32 = arith.mulf %19, %31 : vector<2x16x128xf32>
    %33 = arith.mulf %22, %28 : vector<2x16x128xf32>
    %34 = arith.subf %32, %33 : vector<2x16x128xf32>
    %35 = arith.mulf %7, %34 : vector<2x16x128xf32>
    %36 = arith.mulf %22, %25 : vector<2x16x128xf32>
    %37 = arith.mulf %16, %31 : vector<2x16x128xf32>
    %38 = arith.subf %36, %37 : vector<2x16x128xf32>
    %39 = arith.mulf %10, %38 : vector<2x16x128xf32>
    %40 = arith.addf %35, %39 : vector<2x16x128xf32>
    %41 = arith.mulf %16, %28 : vector<2x16x128xf32>
    %42 = arith.mulf %19, %25 : vector<2x16x128xf32>
    %43 = arith.subf %41, %42 : vector<2x16x128xf32>
    %44 = arith.mulf %13, %43 : vector<2x16x128xf32>
    %45 = arith.addf %40, %44 : vector<2x16x128xf32>
    %c0_29 = arith.constant 0 : index
    %46 = arith.index_cast %4 : i32 to index
    %c0_30 = arith.constant 0 : index
    %47 = vector.load %arg3[%c0_29, %46, %c0_30] : memref<2x16x128xf32, #tpu.memory_space<vmem>>, vector<2x16x128xf32>
    %48 = arith.addf %47, %45 : vector<2x16x128xf32>
    %c0_31 = arith.constant 0 : index
    %49 = arith.index_cast %4 : i32 to index
    %c0_32 = arith.constant 0 : index
    %50 = vector.load %arg3[%c0_31, %49, %c0_32] : memref<2x16x128xf32, #tpu.memory_space<vmem>>, vector<2x16x128xf32>
    tpu.vector_store %arg3[%c0_31, %49, %c0_32], %48 {strides = array<i32>} : memref<2x16x128xf32, #tpu.memory_space<vmem>>, vector<2x16x128xf32>,
    %c1_i32 = arith.constant 1 : i32
    %c0_i32_33 = arith.constant 0 : i32
    %51 = arith.cmpi eq, %arg0, %c0_i32_33 : i32
    %52 = arith.extui %51 : i1 to i32
    %c0_i32_34 = arith.constant 0 : i32
    %53 = arith.cmpi ne, %52, %c0_i32_34 : i32
    scf.if %53 {
      %c0_35 = arith.constant 0 : index
      %c0_36 = arith.constant 0 : index
      %c0_37 = arith.constant 0 : index
      %54 = vector.load %arg3[%c0_35, %c0_36, %c0_37] : memref<2x16x128xf32, #tpu.memory_space<vmem>>, vector<2x16x128xf32>
      %cst = arith.constant dense<0.000000e+00> : vector<2x128xf32>
      %55 = vector.multi_reduction <add>, %54, %cst [1] : vector<2x16x128xf32> to vector<2x128xf32>
      %cst_38 = arith.constant dense<0.000000e+00> : vector<2xf32>
      %56 = vector.multi_reduction <add>, %55, %cst_38 [1] : vector<2x128xf32> to vector<2xf32>
      %57 = vector.shape_cast %56 : vector<2xf32> to vector<2x1xf32>
      %c0_39 = arith.constant 0 : index
      %c0_40 = arith.constant 0 : index
      %58 = vector.load %arg2[%c0_39, %c0_40] : memref<2x1xf32, #tpu.memory_space<vmem>>, vector<2x1xf32>
      tpu.vector_store %arg2[%c0_39, %c0_40], %57 {strides = array<i32>} : memref<2x1xf32, #tpu.memory_space<vmem>>, vector<2x1xf32>,
    } else {
    }
    return
  }
  func.func @transform_0(%arg0: i32) -> (i32, i32, i32, i32, i32) {
    %c0_i32 = arith.constant 0 : i32
    %c0_i32_0 = arith.constant 0 : i32
    %c0_i32_1 = arith.constant 0 : i32
    %c0_i32_2 = arith.constant 0 : i32
    %c0_i32_3 = arith.constant 0 : i32
    return %arg0, %c0_i32, %c0_i32_0, %c0_i32_1, %c0_i32_2 : i32, i32, i32, i32, i32
  }
  func.func @transform_1(%arg0: i32) -> (i32, i32) {
    %c0_i32 = arith.constant 0 : i32
    %c0_i32_0 = arith.constant 0 : i32
    %c0_i32_1 = arith.constant 0 : i32
    return %c0_i32, %c0_i32_0 : i32, i32
  }
}

</mosaic_0001>

<llo_original>
// kernel: tpu_custom_call.1
$region0: #{tpu_custom_call.1}
  #allocation0 [shape = 'u32[]', space=smem, size = 0x4, offset = 0x4, fixed_abs, tag = 'smem constant byte address 0x4 - core index']
  #allocation1 [shape = 'u32[144,128]{1,0:T(1,128)}', space=vmem, size = 0x12000, scoped, tag = 'internal scratch']
  #allocation2 [shape = 'f32[2,16,128]{2,1,0:T(8,128)}', space=vmem, size = 0x4000, scoped, tag = 'scratch operand']
  %s0 = inlined_call_operand.hbm [shape: f32[1,9,2,16,128], index: 0, kind: input, shape index: {}]
  %s1 = inlined_call_operand.vmem [shape: f32[2,1], index: 1, kind: output, shape index: {}]
  %s2 = sld [smem:[#allocation0]]
  $region26: #{tpu_custom_call.1} parent=0
    _
  %s4 = ssub.s32 1, %s2
  %s5 = scalar_select 0, %s4, %s2
  $region1: #{tpu_custom_call.1} parent=0
    #allocation3 [shape = 'u8[147456]{0}', space=vmem, size = 0x24000, scoped, tag = 'input window, operand 0, single buffered']
    #allocation4 [shape = 's32[1]{0}', space=sflag, size = 0x4, scoped, tag = 'scoped memory for tpu_custom_call.1']
    %6 = vsyncpa [#allocation4], 0
    // Predicated region
    $region2: #{tpu_custom_call.1} parent=1 // pred_check
      _
    $region3: #{tpu_custom_call.1} parent=1 // pred_check_branch
      %8 = sbr.rel (0) target = $region5
    $region4: #{tpu_custom_call.1} parent=1 // pred_region
      %s10 = ssub.s32 4608, 4608
      %11 = vsyncadd [#allocation4], %s10
      %s12 = sshll.u32 [#allocation3], 4
      %s13 = int_to_ptr.vmem [resolvable:$true] %s12
      %18 = dma.hbm_to_vmem [thread:$0]  %s0, 4608, %s13, [#allocation4], 128, 128, 8
    $region5: #{tpu_custom_call.1} parent=1 // pred_fallthru
      _
    // Predicated region
    $region6: #{tpu_custom_call.1} parent=1 // pred_check
      _
    $region7: #{tpu_custom_call.1} parent=1 // pred_check_branch
      %20 = sbr.rel (0) target = $region9
    $region8: #{tpu_custom_call.1} parent=1 // pred_region
      %21 = dma.done [#allocation4], 4608
    $region9: #{tpu_custom_call.1} parent=1 // pred_fallthru
      _
    %p22 = scmp.eq.s32.totalorder 0, 0
    // Predicated region
    $region10: #{tpu_custom_call.1} parent=1 // pred_check
      %p23 = pneg %p22
    $region11: #{tpu_custom_call.1} parent=1 // pred_check_branch
      %25 = sbr.rel (%p23) target = $region13
    $region12: #{tpu_custom_call.1} parent=1 // pred_region
      %26 = vst [vmem:[#allocation2] sm:$0xff] 0.0
      %27 = vst [vmem:[#allocation2 + $0x8] sm:$0xff] 0.0
      %28 = vst [vmem:[#allocation2 + $0x10] sm:$0xff] 0.0
      %29 = vst [vmem:[#allocation2 + $0x18] sm:$0xff] 0.0
    $region13: #{tpu_custom_call.1} parent=1 // pred_fallthru
      _
    %v30 = vld [vmem:[#allocation3] sm:$0xff]
    %v31 = vld [vmem:[#allocation3 + $0x8] sm:$0xff]
    %v32 = vld [vmem:[#allocation3 + $0x10] sm:$0xff]
    %v33 = vld [vmem:[#allocation3 + $0x18] sm:$0xff]
    %s34 = sadd.s32 0, 32
    %s35 = scalar_lea.vmem [#allocation3], %s34
    %v36 = vld [vmem:[%s35] sm:$0xff]
    %v37 = vld [vmem:[%s35 + $0x8] sm:$0xff]
    %v38 = vld [vmem:[%s35 + $0x10] sm:$0xff]
    %v39 = vld [vmem:[%s35 + $0x18] sm:$0xff]
    %s40 = sadd.s32 0, 64
    %s41 = scalar_lea.vmem [#allocation3], %s40
    %v42 = vld [vmem:[%s41] sm:$0xff]
    %v43 = vld [vmem:[%s41 + $0x8] sm:$0xff]
    %v44 = vld [vmem:[%s41 + $0x10] sm:$0xff]
    %v45 = vld [vmem:[%s41 + $0x18] sm:$0xff]
    %s46 = sadd.s32 0, 96
    %s47 = scalar_lea.vmem [#allocation3], %s46
    %v48 = vld [vmem:[%s47] sm:$0xff]
    %v49 = vld [vmem:[%s47 + $0x8] sm:$0xff]
    %v50 = vld [vmem:[%s47 + $0x10] sm:$0xff]
    %v51 = vld [vmem:[%s47 + $0x18] sm:$0xff]
    %s52 = sadd.s32 0, 128
    %s53 = scalar_lea.vmem [#allocation3], %s52
    %v54 = vld [vmem:[%s53] sm:$0xff]
    %v55 = vld [vmem:[%s53 + $0x8] sm:$0xff]
    %v56 = vld [vmem:[%s53 + $0x10] sm:$0xff]
    %v57 = vld [vmem:[%s53 + $0x18] sm:$0xff]
    %s58 = sadd.s32 0, 160
    %s59 = scalar_lea.vmem [#allocation3], %s58
    %v60 = vld [vmem:[%s59] sm:$0xff]
    %v61 = vld [vmem:[%s59 + $0x8] sm:$0xff]
    %v62 = vld [vmem:[%s59 + $0x10] sm:$0xff]
    %v63 = vld [vmem:[%s59 + $0x18] sm:$0xff]
    %s64 = sadd.s32 0, 192
    %s65 = scalar_lea.vmem [#allocation3], %s64
    %v66 = vld [vmem:[%s65] sm:$0xff]
    %v67 = vld [vmem:[%s65 + $0x8] sm:$0xff]
    %v68 = vld [vmem:[%s65 + $0x10] sm:$0xff]
    %v69 = vld [vmem:[%s65 + $0x18] sm:$0xff]
    %s70 = sadd.s32 0, 224
    %s71 = scalar_lea.vmem [#allocation3], %s70
    %v72 = vld [vmem:[%s71] sm:$0xff]
    %v73 = vld [vmem:[%s71 + $0x8] sm:$0xff]
    %v74 = vld [vmem:[%s71 + $0x10] sm:$0xff]
    %v75 = vld [vmem:[%s71 + $0x18] sm:$0xff]
    %s76 = sadd.s32 0, 256
    %s77 = scalar_lea.vmem [#allocation3], %s76
    %v78 = vld [vmem:[%s77] sm:$0xff]
    %v79 = vld [vmem:[%s77 + $0x8] sm:$0xff]
    %v80 = vld [vmem:[%s77 + $0x10] sm:$0xff]
    %v81 = vld [vmem:[%s77 + $0x18] sm:$0xff]
    %v82 = vmul.f32 %v54, %v78
    %v83 = vmul.f32 %v55, %v79
    %v84 = vmul.f32 %v56, %v80
    %v85 = vmul.f32 %v57, %v81
    %v86 = vmul.f32 %v60, %v72
    %v87 = vmul.f32 %v61, %v73
    %v88 = vmul.f32 %v62, %v74
    %v89 = vmul.f32 %v63, %v75
    %v90 = vsub.f32 %v82, %v86
    %v91 = vsub.f32 %v83, %v87
    %v92 = vsub.f32 %v84, %v88
    %v93 = vsub.f32 %v85, %v89
    %v94 = vmul.f32 %v30, %v90
    %v95 = vmul.f32 %v31, %v91
    %v96 = vmul.f32 %v32, %v92
    %v97 = vmul.f32 %v33, %v93
    %v98 = vmul.f32 %v60, %v66
    %v99 = vmul.f32 %v61, %v67
    %v100 = vmul.f32 %v62, %v68
    %v101 = vmul.f32 %v63, %v69
    %v102 = vmul.f32 %v48, %v78
    %v103 = vmul.f32 %v49, %v79
    %v104 = vmul.f32 %v50, %v80
    %v105 = vmul.f32 %v51, %v81
    %v106 = vsub.f32 %v98, %v102
    %v107 = vsub.f32 %v99, %v103
    %v108 = vsub.f32 %v100, %v104
    %v109 = vsub.f32 %v101, %v105
    %v110 = vmul.f32 %v36, %v106
    %v111 = vmul.f32 %v37, %v107
    %v112 = vmul.f32 %v38, %v108
    %v113 = vmul.f32 %v39, %v109
    %v114 = vadd.f32 %v94, %v110
    %v115 = vadd.f32 %v95, %v111
    %v116 = vadd.f32 %v96, %v112
    %v117 = vadd.f32 %v97, %v113
    %v118 = vmul.f32 %v48, %v72
    %v119 = vmul.f32 %v49, %v73
    %v120 = vmul.f32 %v50, %v74
    %v121 = vmul.f32 %v51, %v75
    %v122 = vmul.f32 %v54, %v66
    %v123 = vmul.f32 %v55, %v67
    %v124 = vmul.f32 %v56, %v68
    %v125 = vmul.f32 %v57, %v69
    %v126 = vsub.f32 %v118, %v122
    %v127 = vsub.f32 %v119, %v123
    %v128 = vsub.f32 %v120, %v124
    %v129 = vsub.f32 %v121, %v125
    %v130 = vmul.f32 %v42, %v126
    %v131 = vmul.f32 %v43, %v127
    %v132 = vmul.f32 %v44, %v128
    %v133 = vmul.f32 %v45, %v129
    %v134 = vadd.f32 %v114, %v130
    %v135 = vadd.f32 %v115, %v131
    %v136 = vadd.f32 %v116, %v132
    %v137 = vadd.f32 %v117, %v133
    %v138 = vld [vmem:[#allocation2] sm:$0xff]
    %v139 = vld [vmem:[#allocation2 + $0x8] sm:$0xff]
    %v140 = vld [vmem:[#allocation2 + $0x10] sm:$0xff]
    %v141 = vld [vmem:[#allocation2 + $0x18] sm:$0xff]
    %v142 = vadd.f32 %v138, %v134
    %v143 = vadd.f32 %v139, %v135
    %v144 = vadd.f32 %v140, %v136
    %v145 = vadd.f32 %v141, %v137
    %146 = vst [vmem:[#allocation2] sm:$0xff] %v142
    %147 = vst [vmem:[#allocation2 + $0x8] sm:$0xff] %v143
    %148 = vst [vmem:[#allocation2 + $0x10] sm:$0xff] %v144
    %149 = vst [vmem:[#allocation2 + $0x18] sm:$0xff] %v145
    // Predicated region
    $region14: #{tpu_custom_call.1} parent=1 // pred_check
      %p150 = pneg %p22
    $region15: #{tpu_custom_call.1} parent=1 // pred_check_branch
      %152 = sbr.rel (%p150) target = $region17
    $region16: #{tpu_custom_call.1} parent=1 // pred_region
      %v153 = vld [vmem:[#allocation2] sm:$0xff]
      %v154 = vld [vmem:[#allocation2 + $0x8] sm:$0xff]
      %v155 = vld [vmem:[#allocation2 + $0x10] sm:$0xff]
      %v156 = vld [vmem:[#allocation2 + $0x18] sm:$0xff]
      %v157 = vadd.f32 %v153, %v154
      %v158 = vrot.slane %v157, 4
      %v159 = vadd.f32 %v157, %v158
      %v160 = vrot.slane %v159, 2
      %v161 = vadd.f32 %v159, %v160
      %v162 = vrot.slane %v161, 1
      %v163 = vadd.f32 %v161, %v162
      %v164 = vadd.f32 %v155, %v156
      %v165 = vrot.slane %v164, 4
      %v166 = vadd.f32 %v164, %v165
      %v167 = vrot.slane %v166, 2
      %v168 = vadd.f32 %v166, %v167
      %v169 = vrot.slane %v168, 1
      %v170 = vadd.f32 %v168, %v169
      %vm173 = vcmask 1041409
      %v174 = vsel %vm173, %v170, %v163
      %vm176 = vcmask 1041408
      %v177 = vsel %vm176, %v174, 0.0
      %178 = vadd.xlane.f32.xlu0 %v177
      %v179 = vpop.xlane.xlu0 %178
      %vm180 = vcmask 1024
      %181 = vst.msk [vmem:[%s1] sm:$0x3] %vm180, %v179
    $region17: #{tpu_custom_call.1} parent=1 // pred_fallthru
      _
    // Predicated region
    $region18: #{tpu_custom_call.1} parent=1 // pred_check
      _
    $region19: #{tpu_custom_call.1} parent=1 // pred_check_branch
      %183 = sbr.rel (0) target = $region21
    $region20: #{tpu_custom_call.1} parent=1 // pred_region
      _
    $region21: #{tpu_custom_call.1} parent=1 // pred_fallthru
      _
    // Predicated region
    $region22: #{tpu_custom_call.1} parent=1 // pred_check
      _
    $region23: #{tpu_custom_call.1} parent=1 // pred_check_branch
      %185 = sbr.rel (0) target = $region25
    $region24: #{tpu_custom_call.1} parent=1 // pred_region
      _
    $region25: #{tpu_custom_call.1} parent=1 // pred_fallthru
      _
    %186 = vsyncpa [#allocation4], 1

</llo_original>
